<compile_context>
chip_gen: v7x
topology: tpu7x:2x2x1
jax: 0.10.0
libtpu: 0.0.40
codegen_flags: <defaults>
</compile_context>

<pallas_src>
import functools

import jax
import jax.numpy as jnp
from jax import lax
from jax.experimental import pallas as pl
from jax.experimental.pallas import tpu as pltpu

LANE = 128          # TPU lane width
CHUNK_SUB = 16      # inner-loop chunk, in sublane rows of 128 points (2048 pts/chunk)
MAX_TILE_SUB = 512  # grid-step tile, in sublane rows (65536 pts; ~5.5 MiB dbl-buffered)


def _nz_loss_kernel(outs_ref, gt_ref, coord_ref, ce_ref, *,
                    n_rows, n_classes, tile_sub, chunk_sub):
    """Per-tile partial sums for coordinate-MSE and cross-entropy.

    outs_ref: (F, tile_sub, 128)  feature-major; point index = (sublane, lane)
    gt_ref:   (3, tile_sub, 128)  rows: class id, gt_x, gt_y
    coord_ref, ce_ref: (1, 1, 128) per-lane partial sums for this tile
    """
    i = pl.program_id(0)
    n_chunks = tile_sub // chunk_sub

    # Loop-invariant (sublane, lane) -> flat point offset within a chunk.  Hoisted out
    # of the fori_loop so the body only needs an add + compare for the tail mask.
    sub = lax.broadcasted_iota(jnp.int32, (chunk_sub, LANE), 0)
    lane = lax.broadcasted_iota(jnp.int32, (chunk_sub, LANE), 1)
    base_idx = sub * LANE + lane                       # (chunk_sub, 128) int32
    tile_row0 = i * (tile_sub * LANE)

    def body(j, carry):
        coord_acc, ce_acc = carry
        off = pl.multiple_of(j * chunk_sub, chunk_sub)

        def orow(f):
            return outs_ref[f, pl.ds(off, chunk_sub), :].astype(jnp.float32)

        def grow(f):
            return gt_ref[f, pl.ds(off, chunk_sub), :].astype(jnp.float32)

        # ---- coordinate MSE partial: (x - gt_x)^2 + (y - gt_y)^2 ----
        # Padded rows are exact zeros on BOTH sides -> they contribute exactly 0, so
        # no mask is needed here.
        dx = orow(0) - grow(1)
        dy = orow(1) - grow(2)
        d = dx * dx + dy * dy
        coord_acc = coord_acc + jnp.sum(d, axis=0, keepdims=True)

        # ---- cross-entropy partial: logsumexp(logits) - logits[label] ----
        # NOTE: labels are assumed to be valid ids in [0, n_classes), like PyTorch's
        # CrossEntropyLoss; float ids are truncated exactly like tensor.long().
        labels = grow(0).astype(jnp.int32)
        logits = [orow(2 + c) for c in range(n_classes)]   # C is small & static: unroll
        m = logits[0]
        for c in range(1, n_classes):
            m = jnp.maximum(m, logits[c])
        s = jnp.zeros_like(m)
        picked = jnp.zeros_like(m)
        for c in range(n_classes):
            s = s + jnp.exp(logits[c] - m)                 # EUP slot
            picked = picked + jnp.where(labels == c, logits[c], 0.0)
        ce = m + jnp.log(s) - picked

        # Tail mask (only cross-entropy needs it: padded rows would add log(C)).
        valid = (tile_row0 + off * LANE + base_idx) < n_rows
        ce = jnp.where(valid, ce, 0.0)
        ce_acc = ce_acc + jnp.sum(ce, axis=0, keepdims=True)

        return coord_acc, ce_acc

    zeros = jnp.zeros((1, LANE), jnp.float32)
    coord_acc, ce_acc = lax.fori_loop(0, n_chunks, body, (zeros, zeros))
    coord_ref[0] = coord_acc
    ce_ref[0] = ce_acc


def _ceil_to(x, m):
    return -(-x // m) * m


def non_zero_loss(outs, ground_truth,
                  coordinate_loss_multiplier=1.0, class_loss_multiplier=1.0):
    """JAX/Pallas port of non_zero_loss.forward (MSE-fallback coordinate loss)."""
    B, P, F = outs.shape
    G = ground_truth.shape[-1]
    n_classes = F - 2
    n_rows = B * P

    n_sub = -(-n_rows // LANE)                                  # sublane rows of points
    tile_sub = min(MAX_TILE_SUB, _ceil_to(n_sub, CHUNK_SUB))    # multiple of CHUNK_SUB
    num_tiles = -(-n_sub // tile_sub)
    n_pad = num_tiles * tile_sub * LANE
    chunk_sub = min(CHUNK_SUB, tile_sub)

    # Feature-major, lane-dense repack: point axis -> (sublane, lane). Native dtype is
    # kept through the DMA; the f32 cast happens inside the kernel after the load.
    outs_fm = outs.reshape(n_rows, F).T                         # (F, N)
    outs_fm = jnp.pad(outs_fm, ((0, 0), (0, n_pad - n_rows)))
    outs_fm = outs_fm.reshape(F, n_pad // LANE, LANE)

    # Only the ground-truth columns actually used: class id (1), x (2), y (3).
    gt_fm = ground_truth.reshape(n_rows, G)[:, 1:4].T           # (3, N)
    gt_fm = jnp.pad(gt_fm, ((0, 0), (0, n_pad - n_rows)))
    gt_fm = gt_fm.reshape(3, n_pad // LANE, LANE)

    kernel = functools.partial(
        _nz_loss_kernel, n_rows=n_rows, n_classes=n_classes,
        tile_sub=tile_sub, chunk_sub=chunk_sub)

    part = jax.ShapeDtypeStruct((num_tiles, 1, LANE), jnp.float32)
    coord_parts, ce_parts = pl.pallas_call(
        kernel,
        grid=(num_tiles,),
        in_specs=[
            pl.BlockSpec((F, tile_sub, LANE), lambda i: (0, i, 0)),
            pl.BlockSpec((3, tile_sub, LANE), lambda i: (0, i, 0)),
        ],
        out_specs=(
            pl.BlockSpec((1, 1, LANE), lambda i: (i, 0, 0)),
            pl.BlockSpec((1, 1, LANE), lambda i: (i, 0, 0)),
        ),
        out_shape=(part, part),
        compiler_params=pltpu.CompilerParams(
            dimension_semantics=("parallel",),   # independent per-tile partial sums
            vmem_limit_bytes=32 * 1024 * 1024,
        ),
    )(outs_fm, gt_fm)

    # Tiny final reduction + normalization in the wrapper.
    coord_loss = jnp.sum(coord_parts) / jnp.float32(n_rows * 2)
    cls_loss = jnp.sum(ce_parts) / jnp.float32(n_rows)
    total = (jnp.float32(coordinate_loss_multiplier) * coord_loss
             + jnp.float32(class_loss_multiplier) * cls_loss)
    return total, coord_loss, cls_loss


def _reference(outs, gt, cm=1.0, clm=1.0):
    # pure-JAX reference for sanity checking
    coord = jnp.mean((outs[:, :, :2] - gt[:, :, 2:4]) ** 2)
    logits = outs[:, :, 2:].reshape(-1, outs.shape[-1] - 2)
    labels = gt[:, :, 1].astype(jnp.int32).reshape(-1)
    logp = jax.nn.log_softmax(logits, axis=-1)
    cls = -jnp.mean(jnp.take_along_axis(logp, labels[:, None], axis=1))
    return cm * coord + clm * cls, coord, cls


if __name__ == "__main__":
    key = jax.random.PRNGKey(0)
    B, P, C = 2, 8, 6          # batch, max_points, n point classes
    F = 2 + C                  # x, y + class logits
    G = 6                      # ground-truth feature columns

    k1, k2, k3 = jax.random.split(key, 3)
    outs = jax.random.normal(k1, (B, P, F), dtype=jnp.float32)

    gt = jax.random.normal(k2, (B, P, G), dtype=jnp.float32)
    gt_classes = jax.random.randint(k3, (B, P), 0, C).astype(jnp.float32)
    gt = gt.at[:, :, 1].set(gt_classes)                            # class id column
    gt = gt.at[:, :, 5].set((gt_classes > 0).astype(jnp.float32))  # non-zero flag

    total, coord, cls = non_zero_loss(outs, gt, 1.0, 1.0)
    jax.block_until_ready(total)

    t_ref, c_ref, l_ref = _reference(outs, gt)
    assert jnp.allclose(total, t_ref, atol=1e-4, rtol=1e-4), (total, t_ref)
    assert jnp.allclose(coord, c_ref, atol=1e-4, rtol=1e-4), (coord, c_ref)
    assert jnp.allclose(cls, l_ref, atol=1e-4, rtol=1e-4), (cls, l_ref)

    print("KERNEL_OK")
</pallas_src>

<mosaic_0001>
module attributes {stable_mosaic.version = 11 : i64} {
  func.func @_nz_loss_kernel(%arg0: i32, %arg1: memref<8x16x128xf32, #tpu.memory_space<vmem>>, %arg2: memref<3x16x128xf32, #tpu.memory_space<vmem>>, %arg3: memref<1x1x128xf32, #tpu.memory_space<vmem>>, %arg4: memref<1x1x128xf32, #tpu.memory_space<vmem>>) attributes {dimension_semantics = [#tpu.dimension_semantics<parallel>], iteration_bounds = array<i64: 1>, scalar_prefetch = 0 : i64, scratch_operands = 0 : i64, tpu.core_type = #tpu.core_type<tc>, window_params = [{transform_indices = @transform_0, window_bounds = array<i64: 8, 16, 128>}, {transform_indices = @transform_1, window_bounds = array<i64: 3, 16, 128>}, {transform_indices = @transform_2, window_bounds = array<i64: 1, 1, 128>}, {transform_indices = @transform_3, window_bounds = array<i64: 1, 1, 128>}]} {
    %0 = tpu.iota {dimensions = array<i32: 0>} : vector<16x128xi32>
    %1 = tpu.iota {dimensions = array<i32: 1>} : vector<16x128xi32>
    %c128_i32 = arith.constant 128 : i32
    %2 = vector.broadcast %c128_i32 : i32 to vector<16x128xi32>
    %3 = arith.muli %0, %2 : vector<16x128xi32>
    %4 = arith.addi %3, %1 : vector<16x128xi32>
    %c2048_i32 = arith.constant 2048 : i32
    %5 = arith.muli %arg0, %c2048_i32 : i32
    %cst = arith.constant 0.000000e+00 : f32
    %6 = vector.broadcast %cst : f32 to vector<1x128xf32>
    %c0_i32 = arith.constant 0 : i32
    %c16_i32 = arith.constant 16 : i32
    %7 = arith.muli %c0_i32, %c16_i32 : i32
    %8 = tpu.assume_multiple %7, 16 : i32
    %c0 = arith.constant 0 : index
    %9 = arith.index_cast %8 : i32 to index
    %c0_0 = arith.constant 0 : index
    %10 = vector.load %arg1[%c0, %9, %c0_0] : memref<8x16x128xf32, #tpu.memory_space<vmem>>, vector<1x16x128xf32>
    %11 = vector.shape_cast %10 : vector<1x16x128xf32> to vector<16x128xf32>
    %c1 = arith.constant 1 : index
    %12 = arith.index_cast %8 : i32 to index
    %c0_1 = arith.constant 0 : index
    %13 = vector.load %arg2[%c1, %12, %c0_1] : memref<3x16x128xf32, #tpu.memory_space<vmem>>, vector<1x16x128xf32>
    %14 = vector.shape_cast %13 : vector<1x16x128xf32> to vector<16x128xf32>
    %15 = arith.subf %11, %14 : vector<16x128xf32>
    %c1_2 = arith.constant 1 : index
    %16 = arith.index_cast %8 : i32 to index
    %c0_3 = arith.constant 0 : index
    %17 = vector.load %arg1[%c1_2, %16, %c0_3] : memref<8x16x128xf32, #tpu.memory_space<vmem>>, vector<1x16x128xf32>
    %18 = vector.shape_cast %17 : vector<1x16x128xf32> to vector<16x128xf32>
    %c2 = arith.constant 2 : index
    %19 = arith.index_cast %8 : i32 to index
    %c0_4 = arith.constant 0 : index
    %20 = vector.load %arg2[%c2, %19, %c0_4] : memref<3x16x128xf32, #tpu.memory_space<vmem>>, vector<1x16x128xf32>
    %21 = vector.shape_cast %20 : vector<1x16x128xf32> to vector<16x128xf32>
    %22 = arith.subf %18, %21 : vector<16x128xf32>
    %23 = arith.mulf %15, %15 : vector<16x128xf32>
    %24 = arith.mulf %22, %22 : vector<16x128xf32>
    %25 = arith.addf %23, %24 : vector<16x128xf32>
    %cst_5 = arith.constant dense<0.000000e+00> : vector<128xf32>
    %26 = vector.multi_reduction <add>, %25, %cst_5 [0] : vector<16x128xf32> to vector<128xf32>
    %27 = vector.shape_cast %26 : vector<128xf32> to vector<1x128xf32>
    %28 = arith.addf %6, %27 : vector<1x128xf32>
    %c0_6 = arith.constant 0 : index
    %29 = arith.index_cast %8 : i32 to index
    %c0_7 = arith.constant 0 : index
    %30 = vector.load %arg2[%c0_6, %29, %c0_7] : memref<3x16x128xf32, #tpu.memory_space<vmem>>, vector<1x16x128xf32>
    %31 = vector.shape_cast %30 : vector<1x16x128xf32> to vector<16x128xf32>
    %32 = arith.fptosi %31 : vector<16x128xf32> to vector<16x128xi32>
    %c2_8 = arith.constant 2 : index
    %33 = arith.index_cast %8 : i32 to index
    %c0_9 = arith.constant 0 : index
    %34 = vector.load %arg1[%c2_8, %33, %c0_9] : memref<8x16x128xf32, #tpu.memory_space<vmem>>, vector<1x16x128xf32>
    %35 = vector.shape_cast %34 : vector<1x16x128xf32> to vector<16x128xf32>
    %c3 = arith.constant 3 : index
    %36 = arith.index_cast %8 : i32 to index
    %c0_10 = arith.constant 0 : index
    %37 = vector.load %arg1[%c3, %36, %c0_10] : memref<8x16x128xf32, #tpu.memory_space<vmem>>, vector<1x16x128xf32>
    %38 = vector.shape_cast %37 : vector<1x16x128xf32> to vector<16x128xf32>
    %c4 = arith.constant 4 : index
    %39 = arith.index_cast %8 : i32 to index
    %c0_11 = arith.constant 0 : index
    %40 = vector.load %arg1[%c4, %39, %c0_11] : memref<8x16x128xf32, #tpu.memory_space<vmem>>, vector<1x16x128xf32>
    %41 = vector.shape_cast %40 : vector<1x16x128xf32> to vector<16x128xf32>
    %c5 = arith.constant 5 : index
    %42 = arith.index_cast %8 : i32 to index
    %c0_12 = arith.constant 0 : index
    %43 = vector.load %arg1[%c5, %42, %c0_12] : memref<8x16x128xf32, #tpu.memory_space<vmem>>, vector<1x16x128xf32>
    %44 = vector.shape_cast %43 : vector<1x16x128xf32> to vector<16x128xf32>
    %c6 = arith.constant 6 : index
    %45 = arith.index_cast %8 : i32 to index
    %c0_13 = arith.constant 0 : index
    %46 = vector.load %arg1[%c6, %45, %c0_13] : memref<8x16x128xf32, #tpu.memory_space<vmem>>, vector<1x16x128xf32>
    %47 = vector.shape_cast %46 : vector<1x16x128xf32> to vector<16x128xf32>
    %c7 = arith.constant 7 : index
    %48 = arith.index_cast %8 : i32 to index
    %c0_14 = arith.constant 0 : index
    %49 = vector.load %arg1[%c7, %48, %c0_14] : memref<8x16x128xf32, #tpu.memory_space<vmem>>, vector<1x16x128xf32>
    %50 = vector.shape_cast %49 : vector<1x16x128xf32> to vector<16x128xf32>
    %51 = arith.maximumf %35, %38 : vector<16x128xf32>
    %52 = arith.maximumf %51, %41 : vector<16x128xf32>
    %53 = arith.maximumf %52, %44 : vector<16x128xf32>
    %54 = arith.maximumf %53, %47 : vector<16x128xf32>
    %55 = arith.maximumf %54, %50 : vector<16x128xf32>
    %cst_15 = arith.constant 0.000000e+00 : f32
    %56 = vector.broadcast %cst_15 : f32 to vector<16x128xf32>
    %cst_16 = arith.constant 0.000000e+00 : f32
    %57 = vector.broadcast %cst_16 : f32 to vector<16x128xf32>
    %58 = arith.subf %35, %55 : vector<16x128xf32>
    %59 = math.exp %58 : vector<16x128xf32>
    %60 = arith.addf %56, %59 : vector<16x128xf32>
    %c0_i32_17 = arith.constant 0 : i32
    %61 = vector.broadcast %c0_i32_17 : i32 to vector<16x128xi32>
    %62 = arith.cmpi eq, %32, %61 : vector<16x128xi32>
    %cst_18 = arith.constant 0.000000e+00 : f32
    %63 = vector.broadcast %cst_18 : f32 to vector<16x128xf32>
    %64 = arith.select %62, %35, %63 : vector<16x128xi1>, vector<16x128xf32>
    %65 = arith.addf %57, %64 : vector<16x128xf32>
    %66 = arith.subf %38, %55 : vector<16x128xf32>
    %67 = math.exp %66 : vector<16x128xf32>
    %68 = arith.addf %60, %67 : vector<16x128xf32>
    %c1_i32 = arith.constant 1 : i32
    %69 = vector.broadcast %c1_i32 : i32 to vector<16x128xi32>
    %70 = arith.cmpi eq, %32, %69 : vector<16x128xi32>
    %cst_19 = arith.constant 0.000000e+00 : f32
    %71 = vector.broadcast %cst_19 : f32 to vector<16x128xf32>
    %72 = arith.select %70, %38, %71 : vector<16x128xi1>, vector<16x128xf32>
    %73 = arith.addf %65, %72 : vector<16x128xf32>
    %74 = arith.subf %41, %55 : vector<16x128xf32>
    %75 = math.exp %74 : vector<16x128xf32>
    %76 = arith.addf %68, %75 : vector<16x128xf32>
    %c2_i32 = arith.constant 2 : i32
    %77 = vector.broadcast %c2_i32 : i32 to vector<16x128xi32>
    %78 = arith.cmpi eq, %32, %77 : vector<16x128xi32>
    %cst_20 = arith.constant 0.000000e+00 : f32
    %79 = vector.broadcast %cst_20 : f32 to vector<16x128xf32>
    %80 = arith.select %78, %41, %79 : vector<16x128xi1>, vector<16x128xf32>
    %81 = arith.addf %73, %80 : vector<16x128xf32>
    %82 = arith.subf %44, %55 : vector<16x128xf32>
    %83 = math.exp %82 : vector<16x128xf32>
    %84 = arith.addf %76, %83 : vector<16x128xf32>
    %c3_i32 = arith.constant 3 : i32
    %85 = vector.broadcast %c3_i32 : i32 to vector<16x128xi32>
    %86 = arith.cmpi eq, %32, %85 : vector<16x128xi32>
    %cst_21 = arith.constant 0.000000e+00 : f32
    %87 = vector.broadcast %cst_21 : f32 to vector<16x128xf32>
    %88 = arith.select %86, %44, %87 : vector<16x128xi1>, vector<16x128xf32>
    %89 = arith.addf %81, %88 : vector<16x128xf32>
    %90 = arith.subf %47, %55 : vector<16x128xf32>
    %91 = math.exp %90 : vector<16x128xf32>
    %92 = arith.addf %84, %91 : vector<16x128xf32>
    %c4_i32 = arith.constant 4 : i32
    %93 = vector.broadcast %c4_i32 : i32 to vector<16x128xi32>
    %94 = arith.cmpi eq, %32, %93 : vector<16x128xi32>
    %cst_22 = arith.constant 0.000000e+00 : f32
    %95 = vector.broadcast %cst_22 : f32 to vector<16x128xf32>
    %96 = arith.select %94, %47, %95 : vector<16x128xi1>, vector<16x128xf32>
    %97 = arith.addf %89, %96 : vector<16x128xf32>
    %98 = arith.subf %50, %55 : vector<16x128xf32>
    %99 = math.exp %98 : vector<16x128xf32>
    %100 = arith.addf %92, %99 : vector<16x128xf32>
    %c5_i32 = arith.constant 5 : i32
    %101 = vector.broadcast %c5_i32 : i32 to vector<16x128xi32>
    %102 = arith.cmpi eq, %32, %101 : vector<16x128xi32>
    %cst_23 = arith.constant 0.000000e+00 : f32
    %103 = vector.broadcast %cst_23 : f32 to vector<16x128xf32>
    %104 = arith.select %102, %50, %103 : vector<16x128xi1>, vector<16x128xf32>
    %105 = arith.addf %97, %104 : vector<16x128xf32>
    %106 = math.log %100 : vector<16x128xf32>
    %107 = arith.addf %55, %106 : vector<16x128xf32>
    %108 = arith.subf %107, %105 : vector<16x128xf32>
    %c128_i32_24 = arith.constant 128 : i32
    %109 = arith.muli %8, %c128_i32_24 : i32
    %110 = arith.addi %5, %109 : i32
    %111 = vector.broadcast %110 : i32 to vector<16x128xi32>
    %112 = arith.addi %111, %4 : vector<16x128xi32>
    %c16_i32_25 = arith.constant 16 : i32
    %113 = vector.broadcast %c16_i32_25 : i32 to vector<16x128xi32>
    %114 = arith.cmpi slt, %112, %113 : vector<16x128xi32>
    %cst_26 = arith.constant 0.000000e+00 : f32
    %115 = vector.broadcast %cst_26 : f32 to vector<16x128xf32>
    %116 = arith.select %114, %108, %115 : vector<16x128xi1>, vector<16x128xf32>
    %cst_27 = arith.constant dense<0.000000e+00> : vector<128xf32>
    %117 = vector.multi_reduction <add>, %116, %cst_27 [0] : vector<16x128xf32> to vector<128xf32>
    %118 = vector.shape_cast %117 : vector<128xf32> to vector<1x128xf32>
    %119 = arith.addf %6, %118 : vector<1x128xf32>
    %c1_i32_28 = arith.constant 1 : i32
    %c0_29 = arith.constant 0 : index
    %c0_30 = arith.constant 0 : index
    %c0_31 = arith.constant 0 : index
    %120 = vector.load %arg3[%c0_29, %c0_30, %c0_31] : memref<1x1x128xf32, #tpu.memory_space<vmem>>, vector<1x1x128xf32>
    %121 = vector.shape_cast %120 : vector<1x1x128xf32> to vector<1x128xf32>
    %122 = vector.shape_cast %28 : vector<1x128xf32> to vector<1x1x128xf32>
    tpu.vector_store %arg3[%c0_29, %c0_30, %c0_31], %122 {strides = array<i32>} : memref<1x1x128xf32, #tpu.memory_space<vmem>>, vector<1x1x128xf32>,
    %c0_32 = arith.constant 0 : index
    %c0_33 = arith.constant 0 : index
    %c0_34 = arith.constant 0 : index
    %123 = vector.load %arg4[%c0_32, %c0_33, %c0_34] : memref<1x1x128xf32, #tpu.memory_space<vmem>>, vector<1x1x128xf32>
    %124 = vector.shape_cast %123 : vector<1x1x128xf32> to vector<1x128xf32>
    %125 = vector.shape_cast %119 : vector<1x128xf32> to vector<1x1x128xf32>
    tpu.vector_store %arg4[%c0_32, %c0_33, %c0_34], %125 {strides = array<i32>} : memref<1x1x128xf32, #tpu.memory_space<vmem>>, vector<1x1x128xf32>,
    return
  }
  func.func @transform_0(%arg0: i32) -> (i32, i32, i32) {
    %c0_i32 = arith.constant 0 : i32
    %c0_i32_0 = arith.constant 0 : i32
    %c0_i32_1 = arith.constant 0 : i32
    return %c0_i32, %arg0, %c0_i32_0 : i32, i32, i32
  }
  func.func @transform_1(%arg0: i32) -> (i32, i32, i32) {
    %c0_i32 = arith.constant 0 : i32
    %c0_i32_0 = arith.constant 0 : i32
    %c0_i32_1 = arith.constant 0 : i32
    return %c0_i32, %arg0, %c0_i32_0 : i32, i32, i32
  }
  func.func @transform_2(%arg0: i32) -> (i32, i32, i32) {
    %c0_i32 = arith.constant 0 : i32
    %c0_i32_0 = arith.constant 0 : i32
    %c0_i32_1 = arith.constant 0 : i32
    return %arg0, %c0_i32, %c0_i32_0 : i32, i32, i32
  }
  func.func @transform_3(%arg0: i32) -> (i32, i32, i32) {
    %c0_i32 = arith.constant 0 : i32
    %c0_i32_0 = arith.constant 0 : i32
    %c0_i32_1 = arith.constant 0 : i32
    return %arg0, %c0_i32, %c0_i32_0 : i32, i32, i32
  }
}

</mosaic_0001>

<llo_original>
// kernel: tpu_custom_call.1
$region0: #{tpu_custom_call.1}
  #allocation0 [shape = 'u32[]', space=smem, size = 0x4, offset = 0x4, fixed_abs, tag = 'smem constant byte address 0x4 - core index']
  #allocation1 [shape = 'u32[144,128]{1,0:T(1,128)}', space=vmem, size = 0x12000, scoped, tag = 'internal scratch']
  %s0 = inlined_call_operand.hbm [shape: f32[8,16,128], index: 0, kind: input, shape index: {}]
  %s1 = inlined_call_operand.hbm [shape: f32[3,16,128], index: 1, kind: input, shape index: {}]
  %s2 = inlined_call_operand.hbm [shape: f32[1,1,128], index: 2, kind: output, shape index: {0}]
  %s3 = inlined_call_operand.hbm [shape: f32[1,1,128], index: 3, kind: output, shape index: {1}]
  %4 = xla_tuple %s2, %s3
  %s5 = sld [smem:[#allocation0]]
  $region34: #{tpu_custom_call.1} parent=0
    _
  %s7 = ssub.s32 1, %s5
  %s8 = scalar_select 0, %s7, %s5
  $region1: #{tpu_custom_call.1} parent=0
    #allocation2 [shape = 'u8[65536]{0}', space=vmem, size = 0x10000, scoped, tag = 'input window, operand 0, single buffered']
    #allocation3 [shape = 's32[1]{0}', space=sflag, size = 0x4, scoped, tag = 'scoped memory for tpu_custom_call.1']
    #allocation4 [shape = 's32[1]{0}', space=sflag, size = 0x4, scoped, tag = 'scoped memory for tpu_custom_call.1']
    #allocation5 [shape = 'u8[24576]{0}', space=vmem, size = 0x6000, scoped, tag = 'input window, operand 1, single buffered']
    #allocation6 [shape = 's32[1]{0}', space=sflag, size = 0x4, scoped, tag = 'scoped memory for tpu_custom_call.1']
    #allocation7 [shape = 'u8[512]{0}', space=vmem, size = 0x400, scoped, tag = 'output window, operand 0, single buffered']
    #allocation8 [shape = 'u8[512]{0}', space=vmem, size = 0x400, scoped, tag = 'output window, operand 1, single buffered']
    #allocation9 [shape = 's32[1]{0}', space=sflag, size = 0x4, scoped, tag = 'scoped memory for tpu_custom_call.1']
    %9 = vsyncpa [#allocation3], 0
    %10 = vsyncpa [#allocation6], 0
    %11 = vsyncpa [#allocation4], 0
    %12 = vsyncpa [#allocation9], 0
    // Predicated region
    $region2: #{tpu_custom_call.1} parent=1 // pred_check
      _
    $region3: #{tpu_custom_call.1} parent=1 // pred_check_branch
      %14 = sbr.rel (0) target = $region5
    $region4: #{tpu_custom_call.1} parent=1 // pred_region
      %s16 = ssub.s32 2048, 2048
      %17 = vsyncadd [#allocation3], %s16
      %s18 = sshll.u32 [#allocation2], 4
      %s19 = int_to_ptr.vmem [resolvable:$true] %s18
      %24 = dma.hbm_to_vmem [thread:$0]  %s0, 2048, %s19, [#allocation3], 128, 128, 8
    $region5: #{tpu_custom_call.1} parent=1 // pred_fallthru
      _
    // Predicated region
    $region6: #{tpu_custom_call.1} parent=1 // pred_check
      _
    $region7: #{tpu_custom_call.1} parent=1 // pred_check_branch
      %26 = sbr.rel (0) target = $region9
    $region8: #{tpu_custom_call.1} parent=1 // pred_region
      %s28 = ssub.s32 768, 768
      %29 = vsyncadd [#allocation6], %s28
      %s30 = sshll.u32 [#allocation5], 4
      %s31 = int_to_ptr.vmem [resolvable:$true] %s30
      %36 = dma.hbm_to_vmem [thread:$0]  %s1, 768, %s31, [#allocation6], 128, 128, 8
    $region9: #{tpu_custom_call.1} parent=1 // pred_fallthru
      _
    // Predicated region
    $region10: #{tpu_custom_call.1} parent=1 // pred_check
      _
    $region11: #{tpu_custom_call.1} parent=1 // pred_check_branch
      %38 = sbr.rel (0) target = $region13
    $region12: #{tpu_custom_call.1} parent=1 // pred_region
      %39 = dma.done [#allocation3], 2048
    $region13: #{tpu_custom_call.1} parent=1 // pred_fallthru
      _
    // Predicated region
    $region14: #{tpu_custom_call.1} parent=1 // pred_check
      _
    $region15: #{tpu_custom_call.1} parent=1 // pred_check_branch
      %41 = sbr.rel (0) target = $region17
    $region16: #{tpu_custom_call.1} parent=1 // pred_region
      %42 = dma.done [#allocation6], 768
    $region17: #{tpu_custom_call.1} parent=1 // pred_fallthru
      _
    %v43 = vlaneseq
    %v44 = vshrl.u32 %v43, 7
    %v45 = vadd.s32 %v44, 8
    %v46 = vlaneseq
    %v47 = vand.u32 %v46, 127
    %v48 = vmul.u32 %v44, 128
    %v49 = vmul.u32 %v45, 128
    %v50 = vadd.s32 %v48, %v47
    %v51 = vadd.s32 %v49, %v47
    %s52 = smul.u32 0, 2048
    %v53 = vld [vmem:[#allocation2] sm:$0xff]
    %v54 = vld [vmem:[#allocation2 + $0x8] sm:$0xff]
    %s55 = sadd.s32 0, 16
    %s56 = scalar_lea.vmem [#allocation5], %s55
    %v57 = vld [vmem:[%s56] sm:$0xff]
    %v58 = vld [vmem:[%s56 + $0x8] sm:$0xff]
    %v59 = vsub.f32 %v53, %v57
    %v60 = vsub.f32 %v54, %v58
    %s61 = scalar_lea.vmem [#allocation2], %s55
    %v62 = vld [vmem:[%s61] sm:$0xff]
    %v63 = vld [vmem:[%s61 + $0x8] sm:$0xff]
    %s64 = sadd.s32 0, 32
    %s65 = scalar_lea.vmem [#allocation5], %s64
    %v66 = vld [vmem:[%s65] sm:$0xff]
    %v67 = vld [vmem:[%s65 + $0x8] sm:$0xff]
    %v68 = vsub.f32 %v62, %v66
    %v69 = vsub.f32 %v63, %v67
    %v70 = vmul.f32 %v59, %v59
    %v71 = vmul.f32 %v60, %v60
    %v72 = vmul.f32 %v68, %v68
    %v73 = vmul.f32 %v69, %v69
    %v74 = vadd.f32 %v70, %v72
    %v75 = vadd.f32 %v71, %v73
    %v76 = vadd.f32 %v74, %v75
    %v77 = vrot.slane %v76, 4
    %v78 = vadd.f32 %v76, %v77
    %v79 = vrot.slane %v78, 2
    %v80 = vadd.f32 %v78, %v79
    %v81 = vrot.slane %v80, 1
    %v82 = vadd.f32 %v80, %v81
    %v83 = vadd.f32 %v82, 0.0
    %v84 = vld [vmem:[#allocation5] sm:$0xff]
    %v85 = vld [vmem:[#allocation5 + $0x8] sm:$0xff]
    %v86 = vcvt.f32.s32.to.zero.pseudo %v84
    %v87 = vcvt.f32.s32.to.zero.pseudo %v85
    %s88 = scalar_lea.vmem [#allocation2], %s64
    %v89 = vld [vmem:[%s88] sm:$0xff]
    %v90 = vld [vmem:[%s88 + $0x8] sm:$0xff]
    %s91 = sadd.s32 0, 48
    %s92 = scalar_lea.vmem [#allocation2], %s91
    %v93 = vld [vmem:[%s92] sm:$0xff]
    %v94 = vld [vmem:[%s92 + $0x8] sm:$0xff]
    %s95 = sadd.s32 0, 64
    %s96 = scalar_lea.vmem [#allocation2], %s95
    %v97 = vld [vmem:[%s96] sm:$0xff]
    %v98 = vld [vmem:[%s96 + $0x8] sm:$0xff]
    %s99 = sadd.s32 0, 80
    %s100 = scalar_lea.vmem [#allocation2], %s99
    %v101 = vld [vmem:[%s100] sm:$0xff]
    %v102 = vld [vmem:[%s100 + $0x8] sm:$0xff]
    %s103 = sadd.s32 0, 96
    %s104 = scalar_lea.vmem [#allocation2], %s103
    %v105 = vld [vmem:[%s104] sm:$0xff]
    %v106 = vld [vmem:[%s104 + $0x8] sm:$0xff]
    %s107 = sadd.s32 0, 112
    %s108 = scalar_lea.vmem [#allocation2], %s107
    %v109 = vld [vmem:[%s108] sm:$0xff]
    %v110 = vld [vmem:[%s108 + $0x8] sm:$0xff]
    %v111 = vmax.f32 %v89, %v93
    %v112 = vmax.f32 %v90, %v94
    %v113 = vmax.f32 %v111, %v97
    %v114 = vmax.f32 %v112, %v98
    %v115 = vmax.f32 %v113, %v101
    %v116 = vmax.f32 %v114, %v102
    %v117 = vmax.f32 %v115, %v105
    %v118 = vmax.f32 %v116, %v106
    %v119 = vmax.f32 %v117, %v109
    %v120 = vmax.f32 %v118, %v110
    %v121 = vsub.f32 %v89, %v119
    %v122 = vsub.f32 %v90, %v120
    %v123 = vmul.f32 %v121, 1.442695
    %v124 = vpow.pop %v123
    %v125 = vmul.f32 %v122, 1.442695
    %v126 = vpow.pop %v125
    %v127 = vadd.f32 %v124, 0.0
    %v128 = vadd.f32 %v126, 0.0
    %vm129 = vcmp.eq.s32.totalorder %v86, 0
    %vm130 = vcmp.eq.s32.totalorder %v87, 0
    %v131 = vsel %vm129, %v89, 0.0
    %v132 = vsel %vm130, %v90, 0.0
    %v133 = vadd.f32 %v131, 0.0
    %v134 = vadd.f32 %v132, 0.0
    %v135 = vsub.f32 %v93, %v119
    %v136 = vsub.f32 %v94, %v120
    %v137 = vmul.f32 %v135, 1.442695
    %v138 = vpow.pop %v137
    %v139 = vmul.f32 %v136, 1.442695
    %v140 = vpow.pop %v139
    %v141 = vadd.f32 %v127, %v138
    %v142 = vadd.f32 %v128, %v140
    %vm143 = vcmp.eq.s32.totalorder %v86, 1
    %vm144 = vcmp.eq.s32.totalorder %v87, 1
    %v145 = vsel %vm143, %v93, 0.0
    %v146 = vsel %vm144, %v94, 0.0
    %v147 = vadd.f32 %v133, %v145
    %v148 = vadd.f32 %v134, %v146
    %v149 = vsub.f32 %v97, %v119
    %v150 = vsub.f32 %v98, %v120
    %v151 = vmul.f32 %v149, 1.442695
    %v152 = vpow.pop %v151
    %v153 = vmul.f32 %v150, 1.442695
    %v154 = vpow.pop %v153
    %v155 = vadd.f32 %v141, %v152
    %v156 = vadd.f32 %v142, %v154
    %vm157 = vcmp.eq.s32.totalorder %v86, 2
    %vm158 = vcmp.eq.s32.totalorder %v87, 2
    %v159 = vsel %vm157, %v97, 0.0
    %v160 = vsel %vm158, %v98, 0.0
    %v161 = vadd.f32 %v147, %v159
    %v162 = vadd.f32 %v148, %v160
    %v163 = vsub.f32 %v101, %v119
    %v164 = vsub.f32 %v102, %v120
    %v165 = vmul.f32 %v163, 1.442695
    %v166 = vpow.pop %v165
    %v167 = vmul.f32 %v164, 1.442695
    %v168 = vpow.pop %v167
    %v169 = vadd.f32 %v155, %v166
    %v170 = vadd.f32 %v156, %v168
    %vm171 = vcmp.eq.s32.totalorder %v86, 3
    %vm172 = vcmp.eq.s32.totalorder %v87, 3
    %v173 = vsel %vm171, %v101, 0.0
    %v174 = vsel %vm172, %v102, 0.0
    %v175 = vadd.f32 %v161, %v173
    %v176 = vadd.f32 %v162, %v174
    %v177 = vsub.f32 %v105, %v119
    %v178 = vsub.f32 %v106, %v120
    %v179 = vmul.f32 %v177, 1.442695
    %v180 = vpow.pop %v179
    %v181 = vmul.f32 %v178, 1.442695
    %v182 = vpow.pop %v181
    %v183 = vadd.f32 %v169, %v180
    %v184 = vadd.f32 %v170, %v182
    %vm185 = vcmp.eq.s32.totalorder %v86, 4
    %vm186 = vcmp.eq.s32.totalorder %v87, 4
    %v187 = vsel %vm185, %v105, 0.0
    %v188 = vsel %vm186, %v106, 0.0
    %v189 = vadd.f32 %v175, %v187
    %v190 = vadd.f32 %v176, %v188
    %v191 = vsub.f32 %v109, %v119
    %v192 = vsub.f32 %v110, %v120
    %v193 = vmul.f32 %v191, 1.442695
    %v194 = vpow.pop %v193
    %v195 = vmul.f32 %v192, 1.442695
    %v196 = vpow.pop %v195
    %v197 = vadd.f32 %v183, %v194
    %v198 = vadd.f32 %v184, %v196
    %vm199 = vcmp.eq.s32.totalorder %v86, 5
    %vm200 = vcmp.eq.s32.totalorder %v87, 5
    %v201 = vsel %vm199, %v109, 0.0
    %v202 = vsel %vm200, %v110, 0.0
    %v203 = vadd.f32 %v189, %v201
    %v204 = vadd.f32 %v190, %v202
    %v205 = vlog2.pop %v197
    %v206 = vmul.f32 %v205, 0.6931472
    %v207 = vlog2.pop %v198
    %v208 = vmul.f32 %v207, 0.6931472
    %v209 = vadd.f32 %v119, %v206
    %v210 = vadd.f32 %v120, %v208
    %v211 = vsub.f32 %v209, %v203
    %v212 = vsub.f32 %v210, %v204
    %s213 = smul.u32 0, 128
    %s214 = sadd.s32 %s52, %s213
    %v215 = vstv %s214
    %v216 = vadd.s32 %v215, %v50
    %v217 = vadd.s32 %v215, %v51
    %vm218 = vcmp.lt.s32.totalorder %v216, 16
    %vm219 = vcmp.lt.s32.totalorder %v217, 16
    %v220 = vsel %vm218, %v211, 0.0
    %v221 = vsel %vm219, %v212, 0.0
    %v222 = vadd.f32 %v220, %v221
    %v223 = vrot.slane %v222, 4
    %v224 = vadd.f32 %v222, %v223
    %v225 = vrot.slane %v224, 2
    %v226 = vadd.f32 %v224, %v225
    %v227 = vrot.slane %v226, 1
    %v228 = vadd.f32 %v226, %v227
    %v229 = vadd.f32 %v228, 0.0
    %230 = vst [vmem:[#allocation7] sm:$0x1] %v83
    %231 = vst [vmem:[#allocation8] sm:$0x1] %v229
    // Predicated region
    $region18: #{tpu_custom_call.1} parent=1 // pred_check
      _
    $region19: #{tpu_custom_call.1} parent=1 // pred_check_branch
      %233 = sbr.rel (0) target = $region21
    $region20: #{tpu_custom_call.1} parent=1 // pred_region
      %s235 = ssub.s32 16, 16
      %236 = vsyncadd [#allocation4], %s235
      %s238 = sshll.u32 [#allocation7], 4
      %s239 = int_to_ptr.vmem [resolvable:$true] %s238
      %241 = dma.vmem_to_hbm [thread:$0]  %s239, 16, %s2, [#allocation4]
    $region21: #{tpu_custom_call.1} parent=1 // pred_fallthru
      _
    // Predicated region
    $region22: #{tpu_custom_call.1} parent=1 // pred_check
      _
    $region23: #{tpu_custom_call.1} parent=1 // pred_check_branch
      %243 = sbr.rel (0) target = $region25
    $region24: #{tpu_custom_call.1} parent=1 // pred_region
      %s245 = ssub.s32 16, 16
      %246 = vsyncadd [#allocation9], %s245
      %s248 = sshll.u32 [#allocation8], 4
      %s249 = int_to_ptr.vmem [resolvable:$true] %s248
      %251 = dma.vmem_to_hbm [thread:$0]  %s249, 16, %s3, [#allocation9]
    $region25: #{tpu_custom_call.1} parent=1 // pred_fallthru
      _
    // Predicated region
    $region26: #{tpu_custom_call.1} parent=1 // pred_check
      _
    $region27: #{tpu_custom_call.1} parent=1 // pred_check_branch
      %253 = sbr.rel (0) target = $region29
    $region28: #{tpu_custom_call.1} parent=1 // pred_region
      %254 = dma.done [#allocation4], 16
    $region29: #{tpu_custom_call.1} parent=1 // pred_fallthru
      _
    // Predicated region
    $region30: #{tpu_custom_call.1} parent=1 // pred_check
      _
    $region31: #{tpu_custom_call.1} parent=1 // pred_check_branch
      %256 = sbr.rel (0) target = $region33
    $region32: #{tpu_custom_call.1} parent=1 // pred_region
      %257 = dma.done [#allocation9], 16
    $region33: #{tpu_custom_call.1} parent=1 // pred_fallthru
      _
    %258 = vsyncpa [#allocation3], 1
    %259 = vsyncpa [#allocation6], 1
    %260 = vsyncpa [#allocation4], 1
    %261 = vsyncpa [#allocation9], 1

</llo_original>
